<compile_context>
chip_gen: v5e
topology: v5e:2x2
jax: 0.10.0
libtpu: 0.0.40
codegen_flags: <defaults>
</compile_context>

<pallas_src>
import functools

import jax
import jax.numpy as jnp
from jax import lax
from jax.experimental import pallas as pl
from jax.experimental.pallas import tpu as pltpu

INPUT_DIM = 32
H1 = 128
H2 = 256
OUT_DIM = 4


def _round_up(x, m):
    return ((x + m - 1) // m) * m


def _choose_tile(B, tile_m):
    """Static (trace-time) batch-tile choice.

    Preference order:
      1. tile divides the 8-padded batch (no z padding / no output slice),
      2. >= 2 grid steps (v7x has 2 TensorCores; the batch axis is "parallel"),
      3. an even number of grid steps (no idle TC on the last step),
      4. the largest tile <= tile_m (amortize ~0.35 us per-grid-step overhead).
    Falls back to padding the batch when no suitable divisor-tile exists.
    Returns (tm, padded_batch).
    """
    B8 = _round_up(B, 8)
    want = max(8, min(_round_up(tile_m, 8), B8))
    lo = min(128, B8)  # don't fragment into tiny tiles just to hit a divisor
    best_key, best_tm = None, None
    for cand in range(lo, want + 1, 8):
        if B8 % cand:
            continue
        steps = B8 // cand
        key = (steps >= 2, steps == 1 or steps % 2 == 0, cand)
        if best_key is None or key > best_key:
            best_key, best_tm = key, cand
    if best_tm is not None:
        return best_tm, B8
    # Fallback: pad the batch to a multiple of the tile.
    tm = want
    while tm >= 256 and pl.cdiv(B8, tm) < 2:
        tm //= 2
    return tm, _round_up(B8, tm)


def _mlp_kernel(z_ref, w1_ref, b1_ref, w2_ref, b2_ref, w3_ref, b3_ref, o_ref,
                *, sub):
    tm = z_ref.shape[0]
    n_sub = tm // sub

    # Loop-invariant bias loads hoisted out of the unrolled loop (JAX does not
    # CSE the re-loads/broadcasts across unrolled iterations).
    b1 = b1_ref[...]
    b2 = b2_ref[...]
    b3 = b3_ref[...]

    def body(i, carry):
        r0 = pl.multiple_of(i * sub, sub)
        x = z_ref[pl.ds(r0, sub), :]
        # layer 1: Linear(input_dim -> 128) + ReLU
        h1 = jnp.dot(x, w1_ref[...], preferred_element_type=jnp.float32)
        h1 = jnp.maximum(h1 + b1, 0.0)
        # layer 2: Linear(128 -> 256) + ReLU
        h2 = jnp.dot(h1, w2_ref[...], preferred_element_type=jnp.float32)
        h2 = jnp.maximum(h2 + b2, 0.0)
        # layer 3: Linear(256 -> 4)
        out = jnp.dot(h2, w3_ref[...], preferred_element_type=jnp.float32) + b3
        o_ref[pl.ds(r0, sub), :] = out.astype(o_ref.dtype)
        return carry

    lax.fori_loop(0, n_sub, body, 0, unroll=True)


@functools.partial(jax.jit, static_argnames=("tile_m",))
def generator_forward(z, params, tile_m=512):
    """Fused MLP forward.  z: [B, INPUT_DIM] float32 -> [B, OUT_DIM] float32."""
    w1, b1, w2, b2, w3, b3 = params
    B, D = z.shape

    # --- static tiling decisions (shapes are static under jit) -------------
    tm, Bp = _choose_tile(B, tile_m)
    # Inner sub-chunk size: bounds vreg pressure of the (sub, 256) h2
    # intermediate; <=128 rows per chain, >=2 chains per tile when tm > 128.
    if tm <= 128:
        sub = tm
    else:
        sub = next(c for c in (128, 64, 32, 16, 8) if tm % c == 0)

    if Bp != B:
        z = jnp.pad(z, ((0, Bp - B), (0, 0)))
    grid = (Bp // tm,)

    out = pl.pallas_call(
        functools.partial(_mlp_kernel, sub=sub),
        out_shape=jax.ShapeDtypeStruct((Bp, OUT_DIM), jnp.float32),
        grid_spec=pltpu.PrefetchScalarGridSpec(
            num_scalar_prefetch=0,
            grid=grid,
            in_specs=[
                pl.BlockSpec((tm, D), lambda i: (i, 0)),        # z tile
                pl.BlockSpec((D, H1), lambda i: (0, 0)),        # w1
                pl.BlockSpec((1, H1), lambda i: (0, 0)),        # b1
                pl.BlockSpec((H1, H2), lambda i: (0, 0)),       # w2
                pl.BlockSpec((1, H2), lambda i: (0, 0)),        # b2
                pl.BlockSpec((H2, OUT_DIM), lambda i: (0, 0)),  # w3
                pl.BlockSpec((1, OUT_DIM), lambda i: (0, 0)),   # b3
            ],
            out_specs=pl.BlockSpec((tm, OUT_DIM), lambda i: (i, 0)),
        ),
        compiler_params=pltpu.CompilerParams(
            dimension_semantics=("parallel",)
        ),
    )(z, w1, b1, w2, b2, w3, b3)

    if Bp != B:
        out = out[:B]
    return out


def init_params(key, input_dim=INPUT_DIM):
    """Deterministic init mimicking PyTorch nn.Linear defaults:
    U(-1/sqrt(fan_in), 1/sqrt(fan_in)).  Weights stored as [in, out]."""
    ks = jax.random.split(key, 6)

    def lin(kw, kb, fan_in, fan_out):
        bound = 1.0 / jnp.sqrt(fan_in)
        w = jax.random.uniform(kw, (fan_in, fan_out), jnp.float32, -bound, bound)
        b = jax.random.uniform(kb, (1, fan_out), jnp.float32, -bound, bound)
        return w, b

    w1, b1 = lin(ks[0], ks[1], input_dim, H1)
    w2, b2 = lin(ks[2], ks[3], H1, H2)
    w3, b3 = lin(ks[4], ks[5], H2, OUT_DIM)
    return (w1, b1, w2, b2, w3, b3)


def reference_forward(z, params):
    w1, b1, w2, b2, w3, b3 = params
    hp = lax.Precision.HIGHEST
    h1 = jnp.maximum(jnp.dot(z, w1, precision=hp) + b1, 0.0)
    h2 = jnp.maximum(jnp.dot(h1, w2, precision=hp) + b2, 0.0)
    return jnp.dot(h2, w3, precision=hp) + b3


if __name__ == "__main__":
    key = jax.random.PRNGKey(0)
    kz, kz2, kz3, kp = jax.random.split(key, 4)
    params = init_params(kp)

    # Small batch (tile clamped to the batch, single grid step, no padding).
    batch = 8
    z = jax.random.normal(kz, (batch, INPUT_DIM), dtype=jnp.float32)
    out = jax.block_until_ready(generator_forward(z, params))
    ref = reference_forward(z, params)
    assert out.shape == (batch, OUT_DIM), out.shape
    assert jnp.allclose(out, ref, atol=1e-4, rtol=1e-4), "mismatch vs reference (B=8)"

    # Larger batch: divisor-tile path (tm=192, 2 grid steps, no z padding).
    batch2 = 384
    z2 = jax.random.normal(kz2, (batch2, INPUT_DIM), dtype=jnp.float32)
    out2 = jax.block_until_ready(generator_forward(z2, params))
    ref2 = reference_forward(z2, params)
    assert out2.shape == (batch2, OUT_DIM), out2.shape
    assert jnp.allclose(out2, ref2, atol=1e-4, rtol=1e-4), "mismatch vs reference (B=384)"

    # Ragged batch: exercises the 8-row padding + output-slice fallback path.
    batch3 = 100
    z3 = jax.random.normal(kz3, (batch3, INPUT_DIM), dtype=jnp.float32)
    out3 = jax.block_until_ready(generator_forward(z3, params))
    ref3 = reference_forward(z3, params)
    assert out3.shape == (batch3, OUT_DIM), out3.shape
    assert jnp.allclose(out3, ref3, atol=1e-4, rtol=1e-4), "mismatch vs reference (B=100)"

    print("KERNEL_OK")
</pallas_src>

<mosaic_0001>
module attributes {stable_mosaic.version = 11 : i64} {
  func.func @_mlp_kernel(%arg0: i32, %arg1: memref<8x32xf32, #tpu.memory_space<vmem>>, %arg2: memref<32x128xf32, #tpu.memory_space<vmem>>, %arg3: memref<1x128xf32, #tpu.memory_space<vmem>>, %arg4: memref<128x256xf32, #tpu.memory_space<vmem>>, %arg5: memref<1x256xf32, #tpu.memory_space<vmem>>, %arg6: memref<256x4xf32, #tpu.memory_space<vmem>>, %arg7: memref<1x4xf32, #tpu.memory_space<vmem>>, %arg8: memref<8x4xf32, #tpu.memory_space<vmem>>) attributes {dimension_semantics = [#tpu.dimension_semantics<parallel>], iteration_bounds = array<i64: 1>, scalar_prefetch = 0 : i64, scratch_operands = 0 : i64, tpu.core_type = #tpu.core_type<tc>, window_params = [{transform_indices = @transform_0, window_bounds = array<i64: 8, 32>}, {pipeline_mode = #tpu.pipeline_mode<synchronous>, transform_indices = @transform_1, window_bounds = array<i64: 32, 128>}, {pipeline_mode = #tpu.pipeline_mode<synchronous>, transform_indices = @transform_2, window_bounds = array<i64: 1, 128>}, {pipeline_mode = #tpu.pipeline_mode<synchronous>, transform_indices = @transform_3, window_bounds = array<i64: 128, 256>}, {pipeline_mode = #tpu.pipeline_mode<synchronous>, transform_indices = @transform_4, window_bounds = array<i64: 1, 256>}, {pipeline_mode = #tpu.pipeline_mode<synchronous>, transform_indices = @transform_5, window_bounds = array<i64: 256, 4>}, {pipeline_mode = #tpu.pipeline_mode<synchronous>, transform_indices = @transform_6, window_bounds = array<i64: 1, 4>}, {transform_indices = @transform_7, window_bounds = array<i64: 8, 4>}]} {
    %c0 = arith.constant 0 : index
    %c0_0 = arith.constant 0 : index
    %0 = vector.load %arg3[%c0, %c0_0] : memref<1x128xf32, #tpu.memory_space<vmem>>, vector<1x128xf32>
    %c0_1 = arith.constant 0 : index
    %c0_2 = arith.constant 0 : index
    %1 = vector.load %arg5[%c0_1, %c0_2] : memref<1x256xf32, #tpu.memory_space<vmem>>, vector<1x256xf32>
    %c0_3 = arith.constant 0 : index
    %c0_4 = arith.constant 0 : index
    %2 = vector.load %arg7[%c0_3, %c0_4] : memref<1x4xf32, #tpu.memory_space<vmem>>, vector<1x4xf32>
    %c0_i32 = arith.constant 0 : i32
    %c8_i32 = arith.constant 8 : i32
    %3 = arith.muli %c0_i32, %c8_i32 : i32
    %4 = tpu.assume_multiple %3, 8 : i32
    %5 = arith.index_cast %4 : i32 to index
    %c0_5 = arith.constant 0 : index
    %6 = vector.load %arg1[%5, %c0_5] : memref<8x32xf32, #tpu.memory_space<vmem>>, vector<8x32xf32>
    %c0_6 = arith.constant 0 : index
    %c0_7 = arith.constant 0 : index
    %7 = vector.load %arg2[%c0_6, %c0_7] : memref<32x128xf32, #tpu.memory_space<vmem>>, vector<32x128xf32>
    %cst = arith.constant dense<0.000000e+00> : vector<8x128xf32>
    %8 = tpu.matmul %6, %7, %cst {dimension_numbers = #tpu.dot_dimension_numbers<[1], [0], [0], [1], [0, 0, 1, 1], [], []>} : vector<8x32xf32>, vector<32x128xf32>, vector<8x128xf32> -> vector<8x128xf32>
    %9 = vector.broadcast %0 : vector<1x128xf32> to vector<8x128xf32>
    %10 = arith.addf %8, %9 : vector<8x128xf32>
    %cst_8 = arith.constant 0.000000e+00 : f32
    %11 = vector.broadcast %cst_8 : f32 to vector<8x128xf32>
    %12 = arith.maximumf %10, %11 : vector<8x128xf32>
    %c0_9 = arith.constant 0 : index
    %c0_10 = arith.constant 0 : index
    %13 = vector.load %arg4[%c0_9, %c0_10] : memref<128x256xf32, #tpu.memory_space<vmem>>, vector<128x256xf32>
    %cst_11 = arith.constant dense<0.000000e+00> : vector<8x256xf32>
    %14 = tpu.matmul %12, %13, %cst_11 {dimension_numbers = #tpu.dot_dimension_numbers<[1], [0], [0], [1], [0, 0, 1, 1], [], []>} : vector<8x128xf32>, vector<128x256xf32>, vector<8x256xf32> -> vector<8x256xf32>
    %15 = vector.broadcast %1 : vector<1x256xf32> to vector<8x256xf32>
    %16 = arith.addf %14, %15 : vector<8x256xf32>
    %cst_12 = arith.constant 0.000000e+00 : f32
    %17 = vector.broadcast %cst_12 : f32 to vector<8x256xf32>
    %18 = arith.maximumf %16, %17 : vector<8x256xf32>
    %c0_13 = arith.constant 0 : index
    %c0_14 = arith.constant 0 : index
    %19 = vector.load %arg6[%c0_13, %c0_14] : memref<256x4xf32, #tpu.memory_space<vmem>>, vector<256x4xf32>
    %cst_15 = arith.constant dense<0.000000e+00> : vector<8x4xf32>
    %20 = tpu.matmul %18, %19, %cst_15 {dimension_numbers = #tpu.dot_dimension_numbers<[1], [0], [0], [1], [0, 0, 1, 1], [], []>} : vector<8x256xf32>, vector<256x4xf32>, vector<8x4xf32> -> vector<8x4xf32>
    %21 = vector.broadcast %2 : vector<1x4xf32> to vector<8x4xf32>
    %22 = arith.addf %20, %21 : vector<8x4xf32>
    %23 = arith.index_cast %4 : i32 to index
    %c0_16 = arith.constant 0 : index
    %24 = vector.load %arg8[%23, %c0_16] : memref<8x4xf32, #tpu.memory_space<vmem>>, vector<8x4xf32>
    tpu.vector_store %arg8[%23, %c0_16], %22 {strides = array<i32>} : memref<8x4xf32, #tpu.memory_space<vmem>>, vector<8x4xf32>,
    %c1_i32 = arith.constant 1 : i32
    return
  }
  func.func @transform_0(%arg0: i32) -> (i32, i32) {
    %c0_i32 = arith.constant 0 : i32
    %c0_i32_0 = arith.constant 0 : i32
    return %arg0, %c0_i32 : i32, i32
  }
  func.func @transform_1(%arg0: i32) -> (i32, i32) {
    %c0_i32 = arith.constant 0 : i32
    %c0_i32_0 = arith.constant 0 : i32
    %c0_i32_1 = arith.constant 0 : i32
    return %c0_i32, %c0_i32_0 : i32, i32
  }
  func.func @transform_2(%arg0: i32) -> (i32, i32) {
    %c0_i32 = arith.constant 0 : i32
    %c0_i32_0 = arith.constant 0 : i32
    %c0_i32_1 = arith.constant 0 : i32
    return %c0_i32, %c0_i32_0 : i32, i32
  }
  func.func @transform_3(%arg0: i32) -> (i32, i32) {
    %c0_i32 = arith.constant 0 : i32
    %c0_i32_0 = arith.constant 0 : i32
    %c0_i32_1 = arith.constant 0 : i32
    return %c0_i32, %c0_i32_0 : i32, i32
  }
  func.func @transform_4(%arg0: i32) -> (i32, i32) {
    %c0_i32 = arith.constant 0 : i32
    %c0_i32_0 = arith.constant 0 : i32
    %c0_i32_1 = arith.constant 0 : i32
    return %c0_i32, %c0_i32_0 : i32, i32
  }
  func.func @transform_5(%arg0: i32) -> (i32, i32) {
    %c0_i32 = arith.constant 0 : i32
    %c0_i32_0 = arith.constant 0 : i32
    %c0_i32_1 = arith.constant 0 : i32
    return %c0_i32, %c0_i32_0 : i32, i32
  }
  func.func @transform_6(%arg0: i32) -> (i32, i32) {
    %c0_i32 = arith.constant 0 : i32
    %c0_i32_0 = arith.constant 0 : i32
    %c0_i32_1 = arith.constant 0 : i32
    return %c0_i32, %c0_i32_0 : i32, i32
  }
  func.func @transform_7(%arg0: i32) -> (i32, i32) {
    %c0_i32 = arith.constant 0 : i32
    %c0_i32_0 = arith.constant 0 : i32
    return %arg0, %c0_i32 : i32, i32
  }
}

</mosaic_0001>

<llo_original>
// kernel: generator_forward.1
$region0: #{generator_forward.1}
  #allocation0 [shape = 'u32[]', space=smem, size = 0x4, offset = 0x4, fixed_abs, tag = 'smem constant byte address 0x4 - core index']
  #allocation1 [shape = 'u32[72,128]{1,0:T(1,128)}', space=vmem, size = 0x9000, scoped, tag = 'internal scratch']
  %s0 = inlined_call_operand.vmem [shape: f32[8,32], index: 0, kind: input, shape index: {}]
  %s1 = inlined_call_operand.hbm [shape: f32[32,128], index: 1, kind: input, shape index: {}]
  %s2 = inlined_call_operand.hbm [shape: f32[1,128], index: 2, kind: input, shape index: {}]
  %s3 = inlined_call_operand.vmem [shape: f32[128,256], index: 3, kind: input, shape index: {}]
  %s4 = inlined_call_operand.vmem [shape: f32[1,256], index: 4, kind: input, shape index: {}]
  %s5 = inlined_call_operand.vmem [shape: f32[256,4], index: 5, kind: input, shape index: {}]
  %s6 = inlined_call_operand.vmem [shape: f32[1,4], index: 6, kind: input, shape index: {}]
  %s7 = inlined_call_operand.vmem [shape: f32[8,4], index: 7, kind: output, shape index: {}]
  %s8 = sld [smem:[#allocation0]]
  $region46: #{generator_forward.1} parent=0
    _
  %s10 = ssub.s32 1, %s8
  %s11 = scalar_select 0, %s10, %s8
  $region1: #{generator_forward.1} parent=0
    #allocation2 [shape = 'u8[16384]{0}', space=vmem, size = 0x4000, scoped, tag = 'input window, operand 1, single buffered']
    #allocation3 [shape = 's32[1]{0}', space=sflag, size = 0x4, scoped, tag = 'scoped memory for generator_forward.1']
    #allocation4 [shape = 'u8[512]{0}', space=vmem, size = 0x400, scoped, tag = 'input window, operand 2, single buffered']
    #allocation5 [shape = 's32[1]{0}', space=sflag, size = 0x4, scoped, tag = 'scoped memory for generator_forward.1']
    %12 = vsyncpa [#allocation3], 0
    %13 = vsyncpa [#allocation5], 0
    // Predicated region
    $region2: #{generator_forward.1} parent=1 // pred_check
      _
    $region3: #{generator_forward.1} parent=1 // pred_check_branch
      %15 = sbr.rel (0) target = $region5
    $region4: #{generator_forward.1} parent=1 // pred_region
      _
    $region5: #{generator_forward.1} parent=1 // pred_fallthru
      _
    // Predicated region
    $region6: #{generator_forward.1} parent=1 // pred_check
      _
    $region7: #{generator_forward.1} parent=1 // pred_check_branch
      %17 = sbr.rel (0) target = $region9
    $region8: #{generator_forward.1} parent=1 // pred_region
      %19 = vsyncadd [#allocation3], 0
      %s20 = sshll.u32 %s1, 4
      %s21 = int_to_ptr.hbm [resolvable:$true] %s20
      %s22 = sshll.u32 [#allocation2], 4
      %s23 = int_to_ptr.vmem [resolvable:$true] %s22
      %28 = dma.hbm_to_vmem [thread:$0]  %s21, 512, %s23, [#allocation3], 128, 128, 8
    $region9: #{generator_forward.1} parent=1 // pred_fallthru
      _
    // Predicated region
    $region10: #{generator_forward.1} parent=1 // pred_check
      _
    $region11: #{generator_forward.1} parent=1 // pred_check_branch
      %30 = sbr.rel (0) target = $region13
    $region12: #{generator_forward.1} parent=1 // pred_region
      %32 = vsyncadd [#allocation5], 0
      %s34 = sshll.u32 %s2, 4
      %s35 = int_to_ptr.hbm [resolvable:$true] %s34
      %s36 = sshll.u32 [#allocation4], 4
      %s37 = int_to_ptr.vmem [resolvable:$true] %s36
      %39 = dma.hbm_to_vmem [thread:$0]  %s35, 16, %s37, [#allocation5]
    $region13: #{generator_forward.1} parent=1 // pred_fallthru
      _
    // Predicated region
    $region14: #{generator_forward.1} parent=1 // pred_check
      _
    $region15: #{generator_forward.1} parent=1 // pred_check_branch
      %41 = sbr.rel (0) target = $region17
    $region16: #{generator_forward.1} parent=1 // pred_region
      _
    $region17: #{generator_forward.1} parent=1 // pred_fallthru
      _
    // Predicated region
    $region18: #{generator_forward.1} parent=1 // pred_check
      _
    $region19: #{generator_forward.1} parent=1 // pred_check_branch
      %43 = sbr.rel (0) target = $region21
    $region20: #{generator_forward.1} parent=1 // pred_region
      _
    $region21: #{generator_forward.1} parent=1 // pred_fallthru
      _
    // Predicated region
    $region22: #{generator_forward.1} parent=1 // pred_check
      _
    $region23: #{generator_forward.1} parent=1 // pred_check_branch
      %45 = sbr.rel (0) target = $region25
    $region24: #{generator_forward.1} parent=1 // pred_region
      _
    $region25: #{generator_forward.1} parent=1 // pred_fallthru
      _
    // Predicated region
    $region26: #{generator_forward.1} parent=1 // pred_check
      _
    $region27: #{generator_forward.1} parent=1 // pred_check_branch
      %47 = sbr.rel (0) target = $region29
    $region28: #{generator_forward.1} parent=1 // pred_region
      _
    $region29: #{generator_forward.1} parent=1 // pred_fallthru
      _
    // Predicated region
    $region30: #{generator_forward.1} parent=1 // pred_check
      _
    $region31: #{generator_forward.1} parent=1 // pred_check_branch
      %49 = sbr.rel (0) target = $region33
    $region32: #{generator_forward.1} parent=1 // pred_region
      %51 = dma.done [#allocation3], 512
    $region33: #{generator_forward.1} parent=1 // pred_fallthru
      _
    // Predicated region
    $region34: #{generator_forward.1} parent=1 // pred_check
      _
    $region35: #{generator_forward.1} parent=1 // pred_check_branch
      %53 = sbr.rel (0) target = $region37
    $region36: #{generator_forward.1} parent=1 // pred_region
      %55 = dma.done [#allocation5], 16
    $region37: #{generator_forward.1} parent=1 // pred_fallthru
      _
    %v56 = vld [vmem:[#allocation4] sm:$0x1]
    %v57 = vld [vmem:[%s4] sm:$0x3]
    %v58 = vld [vmem:[%s6] sm:$0x1]
    %v59 = vld [vmem:[%s0] sm:$0xff]
    %v60 = vld [vmem:[#allocation2] sm:$0xff]
    %v61 = vld [vmem:[#allocation2 + $0x8] sm:$0xff]
    %v62 = vld [vmem:[#allocation2 + $0x10] sm:$0xff]
    %v63 = vld [vmem:[#allocation2 + $0x18] sm:$0xff]
    %v65 = vperm.slane %v56, 0
    %vm67 = vcmask 261120
    %v69 = vsel %vm67, %v59, 0
    %71 = vmatpush.msra.mxu0 0.0
    %72 = vmatpush.msra.mxu0 0.0
    %73 = vmatpush.msra.mxu0 0.0
    %74 = vmatpush.msra.mxu0 0.0
    %75 = vmatpush.msra.mxu0 0.0
    %76 = vmatpush.msra.mxu0 0.0
    %77 = vmatpush.msra.mxu0 0.0
    %78 = vmatpush.msra.mxu0 0.0
    %79 = vmatpush.msra.mxu0 0.0
    %80 = vmatpush.msra.mxu0 0.0
    %81 = vmatpush.msra.mxu0 0.0
    %82 = vmatpush.msra.mxu0 0.0
    %83 = vmatpush.msra.mxu0 %v63
    %84 = vmatpush.msra.mxu0 %v62
    %85 = vmatpush.msra.mxu0 %v61
    %86 = vmatpush.msra.mxu0 %v60
    %87 = vmatmul.f32.gmra.mxu0 %v69
    %v88 = vpop.f32.mrf.mxu0
    %v89 = vadd.f32 %v65, %v88
    %90 = vdwg.mxu0
    %v91 = vmax.f32 %v89, 0.0
    %v92 = vld [vmem:[%s3] sm:$0xff]
    %v93 = vld [vmem:[%s3 + $0x8] sm:$0xff]
    %v94 = vld [vmem:[%s3 + $0x10] sm:$0xff]
    %v95 = vld [vmem:[%s3 + $0x18] sm:$0xff]
    %v96 = vld [vmem:[%s3 + $0x20] sm:$0xff]
    %v97 = vld [vmem:[%s3 + $0x28] sm:$0xff]
    %v98 = vld [vmem:[%s3 + $0x30] sm:$0xff]
    %v99 = vld [vmem:[%s3 + $0x38] sm:$0xff]
    %v100 = vld [vmem:[%s3 + $0x40] sm:$0xff]
    %v101 = vld [vmem:[%s3 + $0x48] sm:$0xff]
    %v102 = vld [vmem:[%s3 + $0x50] sm:$0xff]
    %v103 = vld [vmem:[%s3 + $0x58] sm:$0xff]
    %v104 = vld [vmem:[%s3 + $0x60] sm:$0xff]
    %v105 = vld [vmem:[%s3 + $0x68] sm:$0xff]
    %v106 = vld [vmem:[%s3 + $0x70] sm:$0xff]
    %v107 = vld [vmem:[%s3 + $0x78] sm:$0xff]
    %v108 = vld [vmem:[%s3 + $0x80] sm:$0xff]
    %v109 = vld [vmem:[%s3 + $0x88] sm:$0xff]
    %v110 = vld [vmem:[%s3 + $0x90] sm:$0xff]
    %v111 = vld [vmem:[%s3 + $0x98] sm:$0xff]
    %v112 = vld [vmem:[%s3 + $0xa0] sm:$0xff]
    %v113 = vld [vmem:[%s3 + $0xa8] sm:$0xff]
    %v114 = vld [vmem:[%s3 + $0xb0] sm:$0xff]
    %v115 = vld [vmem:[%s3 + $0xb8] sm:$0xff]
    %v116 = vld [vmem:[%s3 + $0xc0] sm:$0xff]
    %v117 = vld [vmem:[%s3 + $0xc8] sm:$0xff]
    %v118 = vld [vmem:[%s3 + $0xd0] sm:$0xff]
    %v119 = vld [vmem:[%s3 + $0xd8] sm:$0xff]
    %v120 = vld [vmem:[%s3 + $0xe0] sm:$0xff]
    %v121 = vld [vmem:[%s3 + $0xe8] sm:$0xff]
    %v122 = vld [vmem:[%s3 + $0xf0] sm:$0xff]
    %v123 = vld [vmem:[%s3 + $0xf8] sm:$0xff]
    %v125 = vperm.slane %v57, 0
    %v126 = vperm.slane %v57, 1
    %129 = vmatpush.msra.mxu0 %v122
    %130 = vmatpush.msra.mxu0 %v120
    %131 = vmatpush.msra.mxu0 %v118
    %132 = vmatpush.msra.mxu0 %v116
    %133 = vmatpush.msra.mxu0 %v114
    %134 = vmatpush.msra.mxu0 %v112
    %135 = vmatpush.msra.mxu0 %v110
    %136 = vmatpush.msra.mxu0 %v108
    %137 = vmatpush.msra.mxu0 %v106
    %138 = vmatpush.msra.mxu0 %v104
    %139 = vmatpush.msra.mxu0 %v102
    %140 = vmatpush.msra.mxu0 %v100
    %141 = vmatpush.msra.mxu0 %v98
    %142 = vmatpush.msra.mxu0 %v96
    %143 = vmatpush.msra.mxu0 %v94
    %144 = vmatpush.msra.mxu0 %v92
    %145 = vmatmul.f32.gmra.mxu0 %v91
    %v146 = vpop.f32.mrf.mxu0
    %v147 = vadd.f32 %v125, %v146
    %148 = vdwg.mxu0
    %149 = vmatpush.msra.mxu0 %v123
    %150 = vmatpush.msra.mxu0 %v121
    %151 = vmatpush.msra.mxu0 %v119
    %152 = vmatpush.msra.mxu0 %v117
    %153 = vmatpush.msra.mxu0 %v115
    %154 = vmatpush.msra.mxu0 %v113
    %155 = vmatpush.msra.mxu0 %v111
    %156 = vmatpush.msra.mxu0 %v109
    %157 = vmatpush.msra.mxu0 %v107
    %158 = vmatpush.msra.mxu0 %v105
    %159 = vmatpush.msra.mxu0 %v103
    %160 = vmatpush.msra.mxu0 %v101
    %161 = vmatpush.msra.mxu0 %v99
    %162 = vmatpush.msra.mxu0 %v97
    %163 = vmatpush.msra.mxu0 %v95
    %164 = vmatpush.msra.mxu0 %v93
    %165 = vmatmul.f32.gmra.mxu0 %v91
    %v166 = vpop.f32.mrf.mxu0
    %v167 = vadd.f32 %v126, %v166
    %168 = vdwg.mxu0
    %v169 = vmax.f32 %v147, 0.0
    %v170 = vmax.f32 %v167, 0.0
    %v171 = vld [vmem:[%s5] sm:$0xff]
    %v172 = vld [vmem:[%s5 + $0x8] sm:$0xff]
    %v173 = vld [vmem:[%s5 + $0x10] sm:$0xff]
    %v174 = vld [vmem:[%s5 + $0x18] sm:$0xff]
    %v175 = vld [vmem:[%s5 + $0x20] sm:$0xff]
    %v176 = vld [vmem:[%s5 + $0x28] sm:$0xff]
    %v177 = vld [vmem:[%s5 + $0x30] sm:$0xff]
    %v178 = vld [vmem:[%s5 + $0x38] sm:$0xff]
    %v179 = vld [vmem:[%s5 + $0x40] sm:$0xff]
    %v180 = vld [vmem:[%s5 + $0x48] sm:$0xff]
    %v181 = vld [vmem:[%s5 + $0x50] sm:$0xff]
    %v182 = vld [vmem:[%s5 + $0x58] sm:$0xff]
    %v183 = vld [vmem:[%s5 + $0x60] sm:$0xff]
    %v184 = vld [vmem:[%s5 + $0x68] sm:$0xff]
    %v185 = vld [vmem:[%s5 + $0x70] sm:$0xff]
    %v186 = vld [vmem:[%s5 + $0x78] sm:$0xff]
    %v187 = vld [vmem:[%s5 + $0x80] sm:$0xff]
    %v188 = vld [vmem:[%s5 + $0x88] sm:$0xff]
    %v189 = vld [vmem:[%s5 + $0x90] sm:$0xff]
    %v190 = vld [vmem:[%s5 + $0x98] sm:$0xff]
    %v191 = vld [vmem:[%s5 + $0xa0] sm:$0xff]
    %v192 = vld [vmem:[%s5 + $0xa8] sm:$0xff]
    %v193 = vld [vmem:[%s5 + $0xb0] sm:$0xff]
    %v194 = vld [vmem:[%s5 + $0xb8] sm:$0xff]
    %v195 = vld [vmem:[%s5 + $0xc0] sm:$0xff]
    %v196 = vld [vmem:[%s5 + $0xc8] sm:$0xff]
    %v197 = vld [vmem:[%s5 + $0xd0] sm:$0xff]
    %v198 = vld [vmem:[%s5 + $0xd8] sm:$0xff]
    %v199 = vld [vmem:[%s5 + $0xe0] sm:$0xff]
    %v200 = vld [vmem:[%s5 + $0xe8] sm:$0xff]
    %v201 = vld [vmem:[%s5 + $0xf0] sm:$0xff]
    %v202 = vld [vmem:[%s5 + $0xf8] sm:$0xff]
    %v204 = vperm.slane %v58, 0
    %206 = vmatpush.msra.mxu0 %v186
    %207 = vmatpush.msra.mxu0 %v185
    %208 = vmatpush.msra.mxu0 %v184
    %209 = vmatpush.msra.mxu0 %v183
    %210 = vmatpush.msra.mxu0 %v182
    %211 = vmatpush.msra.mxu0 %v181
    %212 = vmatpush.msra.mxu0 %v180
    %213 = vmatpush.msra.mxu0 %v179
    %214 = vmatpush.msra.mxu0 %v178
    %215 = vmatpush.msra.mxu0 %v177
    %216 = vmatpush.msra.mxu0 %v176
    %217 = vmatpush.msra.mxu0 %v175
    %218 = vmatpush.msra.mxu0 %v174
    %219 = vmatpush.msra.mxu0 %v173
    %220 = vmatpush.msra.mxu0 %v172
    %221 = vmatpush.msra.mxu0 %v171
    %222 = vmatmul.f32.gmra.mxu0 %v169
    %v223 = vpop.f32.mrf.mxu0
    %v224 = vadd.f32 %v204, %v223
    %225 = vdwg.mxu0
    %226 = vmatpush.msra.mxu0 %v202
    %227 = vmatpush.msra.mxu0 %v201
    %228 = vmatpush.msra.mxu0 %v200
    %229 = vmatpush.msra.mxu0 %v199
    %230 = vmatpush.msra.mxu0 %v198
    %231 = vmatpush.msra.mxu0 %v197
    %232 = vmatpush.msra.mxu0 %v196
    %233 = vmatpush.msra.mxu0 %v195
    %234 = vmatpush.msra.mxu0 %v194
    %235 = vmatpush.msra.mxu0 %v193
    %236 = vmatpush.msra.mxu0 %v192
    %237 = vmatpush.msra.mxu0 %v191
    %238 = vmatpush.msra.mxu0 %v190
    %239 = vmatpush.msra.mxu0 %v189
    %240 = vmatpush.msra.mxu0 %v188
    %241 = vmatpush.msra.mxu0 %v187
    %242 = vmatmul.f32.gmra.mxu0 %v170
    %v243 = vpop.f32.mrf.mxu0
    %v244 = vadd.f32 %v224, %v243
    %245 = vdwg.mxu0
    %vm246 = vcmask 31744
    %247 = vst.msk [vmem:[%s7] sm:$0xff] %vm246, %v244
    // Predicated region
    $region38: #{generator_forward.1} parent=1 // pred_check
      _
    $region39: #{generator_forward.1} parent=1 // pred_check_branch
      %249 = sbr.rel (0) target = $region41
    $region40: #{generator_forward.1} parent=1 // pred_region
      _
    $region41: #{generator_forward.1} parent=1 // pred_fallthru
      _
    // Predicated region
    $region42: #{generator_forward.1} parent=1 // pred_check
      _
    $region43: #{generator_forward.1} parent=1 // pred_check_branch
      %251 = sbr.rel (0) target = $region45
    $region44: #{generator_forward.1} parent=1 // pred_region
      _
    $region45: #{generator_forward.1} parent=1 // pred_fallthru
      _
    %252 = vsyncpa [#allocation3], 1
    %253 = vsyncpa [#allocation5], 1

</llo_original>
